<compile_context>
chip_gen: v6e
topology: v6e:2x2x1
jax: 0.10.0
libtpu: 0.0.40
codegen_flags: <defaults>
</compile_context>

<pallas_src>
import functools

import jax
import jax.numpy as jnp
from jax.experimental import pallas as pl
from jax.experimental.pallas import tpu as pltpu


# --------------------------------------------------------------------------
# Utilities
# --------------------------------------------------------------------------
_ROW_TILES = (1024, 512, 256, 128, 64, 32, 16, 8)


def _round_up(a, b):
    return ((a + b - 1) // b) * b


def _vmem_budget_bytes():
    """~75% of the chip's physical VMEM (headroom for Mosaic internal scratch)."""
    try:
        cap = pltpu.get_tpu_info().vmem_capacity_bytes
    except Exception:
        cap = 64 * 1024 * 1024  # conservative (v7x per-TC size)
    return int(cap * 0.75)


def _sigmoid(x):
    # 1 / (1 + exp(-x)); exp -> EUP, approx reciprocal -> EUP, mul -> VPU.
    return pl.reciprocal(1.0 + jnp.exp(-x), approx=True)


def _col_candidates(d_out):
    cands = [d_out]
    for t in (2048, 1024, 512, 256, 128):
        if t < d_out and d_out % t == 0:
            cands.append(t)
    return cands


# --------------------------------------------------------------------------
# Path A: whole MLP fused in one kernel (weights VMEM-resident).
# grid = (M // tm,); activations for a row tile never leave VMEM.
# --------------------------------------------------------------------------
def _fused_mlp_kernel(*refs, n_glu, compute_dtype):
    x_ref, o_ref = refs[0], refs[-1]
    wrefs = refs[1:-1]

    h = x_ref[...].astype(compute_dtype)
    k = 0
    for _ in range(n_glu):
        wo, wg, bo, bg = wrefs[k], wrefs[k + 1], wrefs[k + 2], wrefs[k + 3]
        k += 4
        pre_out = jnp.dot(h, wo[...], preferred_element_type=jnp.float32) + bo[...]
        pre_gate = jnp.dot(h, wg[...], preferred_element_type=jnp.float32) + bg[...]
        glu = pre_out * _sigmoid(pre_gate)          # GLU(dim=-1)
        h = (glu * _sigmoid(glu)).astype(compute_dtype)  # Swish
    w, b = wrefs[k], wrefs[k + 1]
    y = jnp.dot(h, w[...], preferred_element_type=jnp.float32) + b[...]
    o_ref[...] = y.astype(o_ref.dtype)


def _mlp_fused_all(h, glu_layers, w_f, b_f, out_dtype, budget):
    """Returns the output, or None if the weights do not fit the VMEM budget."""
    m, d_in = h.shape
    d_out = w_f.shape[1]

    weight_arrays = [a for layer in glu_layers for a in layer] + [w_f, b_f]

    # VMEM accounting: weights/biases are double-buffered by BlockSpec even
    # though the constant index_map means they are DMA'd only once.
    fixed = 2 * sum(int(a.size) * a.dtype.itemsize for a in weight_arrays)
    fixed += 2 * 1024 * 1024  # slack for Mosaic internal scratch

    widths = [wo.shape[1] for (wo, _wg, _bo, _bg) in glu_layers]
    per_row = 2 * d_in * h.dtype.itemsize                    # x tile, double-buffered
    per_row += 2 * d_out * jnp.dtype(out_dtype).itemsize     # out tile, double-buffered
    per_row += sum(5 * w * 4 for w in widths)                # f32 temporaries (rough)
    per_row += d_out * 4

    tm = None
    for cand in _ROW_TILES:
        if fixed + cand * per_row <= budget:
            tm = cand
            break
    if tm is None:
        return None  # weights too large -> layer-by-layer fallback
    tm = min(tm, _round_up(max(m, 8), 8))

    m_pad = _round_up(m, tm)
    if m_pad != m:
        h = jnp.pad(h, ((0, m_pad - m), (0, 0)))

    in_specs = [pl.BlockSpec((tm, d_in), lambda i: (i, 0))]
    # Full-extent weight blocks; constant index_map -> single resident copy.
    in_specs += [pl.BlockSpec(a.shape, lambda i: (0, 0)) for a in weight_arrays]

    kernel = functools.partial(
        _fused_mlp_kernel, n_glu=len(glu_layers), compute_dtype=w_f.dtype)
    out = pl.pallas_call(
        kernel,
        out_shape=jax.ShapeDtypeStruct((m_pad, d_out), out_dtype),
        grid_spec=pltpu.PrefetchScalarGridSpec(
            num_scalar_prefetch=0,
            grid=(m_pad // tm,),
            in_specs=in_specs,
            out_specs=pl.BlockSpec((tm, d_out), lambda i: (i, 0)),
        ),
        compiler_params=pltpu.CompilerParams(
            dimension_semantics=("parallel",),
            vmem_limit_bytes=budget,
        ),
    )(h, *weight_arrays)
    return out[:m]


# --------------------------------------------------------------------------
# Path B (fallback for very large layers): layer-by-layer kernels.
# --------------------------------------------------------------------------
def _glu_layer_kernel(x_ref, wo_ref, wg_ref, bo_ref, bg_ref, o_ref, *, compute_dtype):
    x = x_ref[...].astype(compute_dtype)
    pre_out = jnp.dot(x, wo_ref[...], preferred_element_type=jnp.float32) + bo_ref[...]
    pre_gate = jnp.dot(x, wg_ref[...], preferred_element_type=jnp.float32) + bg_ref[...]
    glu = pre_out * _sigmoid(pre_gate)
    o_ref[...] = (glu * _sigmoid(glu)).astype(o_ref.dtype)


def _linear_kernel(x_ref, w_ref, b_ref, o_ref, *, compute_dtype):
    y = jnp.dot(x_ref[...].astype(compute_dtype), w_ref[...],
                preferred_element_type=jnp.float32) + b_ref[...]
    o_ref[...] = y.astype(o_ref.dtype)


def _pick_layer_tiles(m, d_in, d_out, n_w_halves, x_itemsize, w_itemsize,
                      out_itemsize, budget):
    choice = None
    for tn in _col_candidates(d_out):
        fixed = 2 * (n_w_halves * d_in * tn * w_itemsize + n_w_halves * tn * 4)
        fixed += 2 * 1024 * 1024
        per_row = 2 * d_in * x_itemsize + 2 * tn * out_itemsize + 4 * tn * 4
        for tm in _ROW_TILES:
            if fixed + tm * per_row <= budget:
                choice = (tm, tn)
                break
        if choice is not None:
            break
    if choice is None:
        # TODO(synk): layers this large would also need K (d_in) tiling.
        choice = (8, _col_candidates(d_out)[-1])
    tm, tn = choice
    tm = min(tm, _round_up(max(m, 8), 8))
    return tm, tn


def _glu_layer(h, wo, wg, bo, bg, out_dtype, budget):
    m, d_in = h.shape
    d_out = wo.shape[1]
    tm, tn = _pick_layer_tiles(m, d_in, d_out, 2, h.dtype.itemsize,
                               wo.dtype.itemsize, jnp.dtype(out_dtype).itemsize,
                               budget)
    m_pad = _round_up(m, tm)
    if m_pad != m:
        h = jnp.pad(h, ((0, m_pad - m), (0, 0)))

    kernel = functools.partial(_glu_layer_kernel, compute_dtype=wo.dtype)
    out = pl.pallas_call(
        kernel,
        out_shape=jax.ShapeDtypeStruct((m_pad, d_out), out_dtype),
        grid_spec=pltpu.PrefetchScalarGridSpec(
            num_scalar_prefetch=0,
            grid=(m_pad // tm, d_out // tn),
            in_specs=[
                pl.BlockSpec((tm, d_in), lambda i, j: (i, 0)),
                pl.BlockSpec((d_in, tn), lambda i, j: (0, j)),
                pl.BlockSpec((d_in, tn), lambda i, j: (0, j)),
                pl.BlockSpec((1, tn), lambda i, j: (0, j)),
                pl.BlockSpec((1, tn), lambda i, j: (0, j)),
            ],
            out_specs=pl.BlockSpec((tm, tn), lambda i, j: (i, j)),
        ),
        compiler_params=pltpu.CompilerParams(
            dimension_semantics=("parallel", "parallel"),
            vmem_limit_bytes=budget,
        ),
    )(h, wo, wg, bo, bg)
    return out[:m]


def _linear_layer(h, w, b, out_dtype, budget):
    m, d_in = h.shape
    d_out = w.shape[1]
    tm, tn = _pick_layer_tiles(m, d_in, d_out, 1, h.dtype.itemsize,
                               w.dtype.itemsize, jnp.dtype(out_dtype).itemsize,
                               budget)
    m_pad = _round_up(m, tm)
    if m_pad != m:
        h = jnp.pad(h, ((0, m_pad - m), (0, 0)))

    kernel = functools.partial(_linear_kernel, compute_dtype=w.dtype)
    out = pl.pallas_call(
        kernel,
        out_shape=jax.ShapeDtypeStruct((m_pad, d_out), out_dtype),
        grid_spec=pltpu.PrefetchScalarGridSpec(
            num_scalar_prefetch=0,
            grid=(m_pad // tm, d_out // tn),
            in_specs=[
                pl.BlockSpec((tm, d_in), lambda i, j: (i, 0)),
                pl.BlockSpec((d_in, tn), lambda i, j: (0, j)),
                pl.BlockSpec((1, tn), lambda i, j: (0, j)),
            ],
            out_specs=pl.BlockSpec((tm, tn), lambda i, j: (i, j)),
        ),
        compiler_params=pltpu.CompilerParams(
            dimension_semantics=("parallel", "parallel"),
            vmem_limit_bytes=budget,
        ),
    )(h, w, b)
    return out[:m]


# --------------------------------------------------------------------------
# Parameter preparation (one-time split + cast, outside the hot path) and
# the MLP forward matching nn.Sequential([Linear, GLU, Swish]*(L-1)+[Linear]).
# params[i] = {"w": (dims[i], width_i), "b": (1, width_i)}
#   width_i = 2*dims[i+1] for GLU layers, dims[-1] for the final Linear.
# --------------------------------------------------------------------------
def prepare_params(params, dims, compute_dtype=jnp.bfloat16):
    n_linear = len(dims) - 1
    glu_layers = []
    for i in range(n_linear - 1):
        d = dims[i + 1]
        w, b = params[i]["w"], params[i]["b"]
        glu_layers.append((
            w[:, :d].astype(compute_dtype),     # "output" half
            w[:, d:].astype(compute_dtype),     # "gate" half
            b[:, :d].astype(jnp.float32),
            b[:, d:].astype(jnp.float32),
        ))
    w_f = params[n_linear - 1]["w"].astype(compute_dtype)
    b_f = params[n_linear - 1]["b"].astype(jnp.float32)
    return glu_layers, w_f, b_f


def mlp_forward(x, prepared, dims):
    glu_layers, w_f, b_f = prepared
    lead_shape = x.shape[:-1]
    d_in = dims[0]
    out_dtype = x.dtype
    h = x.reshape(-1, d_in)
    budget = _vmem_budget_bytes()

    out = _mlp_fused_all(h, glu_layers, w_f, b_f, out_dtype, budget)
    if out is None:
        # Weights don't all fit in VMEM -> layer-by-layer, bf16 inter-layer acts.
        for (wo, wg, bo, bg) in glu_layers:
            h = _glu_layer(h, wo, wg, bo, bg, wo.dtype, budget)
        out = _linear_layer(h, w_f, b_f, out_dtype, budget)
    return out.reshape(*lead_shape, dims[-1])


# ---------------- pure-JAX reference (f32, for verification) ----------------
def mlp_reference(x, params, dims):
    def sig(v):
        return 1.0 / (1.0 + jnp.exp(-v))

    h = x
    n_linear = len(dims) - 1
    for i in range(n_linear):
        h = h @ params[i]["w"] + params[i]["b"]
        if i < n_linear - 1:
            d = dims[i + 1]
            glu = h[..., :d] * sig(h[..., d:])   # GLU(dim=-1)
            h = glu * sig(glu)                   # Swish
    return h


if __name__ == "__main__":
    key = jax.random.PRNGKey(0)

    def make_params(k, dims, scale=0.2):
        n_linear = len(dims) - 1
        keys = jax.random.split(k, 2 * n_linear)
        params = []
        for i in range(n_linear):
            d_in, d_out = dims[i], dims[i + 1]
            width = 2 * d_out if i < n_linear - 1 else d_out
            w = (scale * jax.random.normal(keys[2 * i], (d_in, width))).astype(jnp.float32)
            b = (scale * jax.random.normal(keys[2 * i + 1], (1, width))).astype(jnp.float32)
            params.append({"w": w, "b": b})
        return params

    kx, kp1, kp2 = jax.random.split(key, 3)

    # Config A: classic [in, hidden, out] MLP -> single fused kernel.
    dims_a = [32, 64, 32]
    x = jax.random.normal(kx, (2, 8, dims_a[0]), dtype=jnp.float32)  # batch=2, seq=8, hidden=32
    params_a = make_params(kp1, dims_a)
    prep_a = prepare_params(params_a, dims_a)
    out_a = jax.block_until_ready(mlp_forward(x, prep_a, dims_a))
    ref_a = mlp_reference(x, params_a, dims_a)
    assert out_a.shape == (2, 8, dims_a[-1])
    assert jnp.allclose(out_a, ref_a, atol=2e-2, rtol=2e-2), "config A mismatch vs reference"

    # Config B: deeper MLP -> two GLU layers + final Linear, still one fused kernel.
    dims_b = [32, 48, 64, 16]
    params_b = make_params(kp2, dims_b)
    prep_b = prepare_params(params_b, dims_b)
    out_b = jax.block_until_ready(mlp_forward(x, prep_b, dims_b))
    ref_b = mlp_reference(x, params_b, dims_b)
    assert out_b.shape == (2, 8, dims_b[-1])
    assert jnp.allclose(out_b, ref_b, atol=2e-2, rtol=2e-2), "config B mismatch vs reference"

    # Config C: leading dims whose product is not a multiple of 8 -> row padding path.
    x_c = jax.random.normal(kx, (3, 5, dims_a[0]), dtype=jnp.float32)
    out_c = jax.block_until_ready(mlp_forward(x_c, prep_a, dims_a))
    ref_c = mlp_reference(x_c, params_a, dims_a)
    assert out_c.shape == (3, 5, dims_a[-1])
    assert jnp.allclose(out_c, ref_c, atol=2e-2, rtol=2e-2), "config C mismatch vs reference"

    print("KERNEL_OK")
</pallas_src>

<mosaic_0001>
module attributes {stable_mosaic.version = 11 : i64} {
  func.func @_fused_mlp_kernel(%arg0: i32, %arg1: memref<16x32xf32, #tpu.memory_space<vmem>>, %arg2: memref<32x64xbf16, #tpu.memory_space<vmem>>, %arg3: memref<32x64xbf16, #tpu.memory_space<vmem>>, %arg4: memref<1x64xf32, #tpu.memory_space<vmem>>, %arg5: memref<1x64xf32, #tpu.memory_space<vmem>>, %arg6: memref<64x32xbf16, #tpu.memory_space<vmem>>, %arg7: memref<1x32xf32, #tpu.memory_space<vmem>>, %arg8: memref<16x32xf32, #tpu.memory_space<vmem>>) attributes {dimension_semantics = [#tpu.dimension_semantics<parallel>], iteration_bounds = array<i64: 1>, scalar_prefetch = 0 : i64, scratch_operands = 0 : i64, tpu.core_type = #tpu.core_type<tc>, window_params = [{transform_indices = @transform_0, window_bounds = array<i64: 16, 32>}, {pipeline_mode = #tpu.pipeline_mode<synchronous>, transform_indices = @transform_1, window_bounds = array<i64: 32, 64>}, {pipeline_mode = #tpu.pipeline_mode<synchronous>, transform_indices = @transform_2, window_bounds = array<i64: 32, 64>}, {pipeline_mode = #tpu.pipeline_mode<synchronous>, transform_indices = @transform_3, window_bounds = array<i64: 1, 64>}, {pipeline_mode = #tpu.pipeline_mode<synchronous>, transform_indices = @transform_4, window_bounds = array<i64: 1, 64>}, {pipeline_mode = #tpu.pipeline_mode<synchronous>, transform_indices = @transform_5, window_bounds = array<i64: 64, 32>}, {pipeline_mode = #tpu.pipeline_mode<synchronous>, transform_indices = @transform_6, window_bounds = array<i64: 1, 32>}, {transform_indices = @transform_7, window_bounds = array<i64: 16, 32>}]} {
    %c0 = arith.constant 0 : index
    %c0_0 = arith.constant 0 : index
    %0 = vector.load %arg1[%c0, %c0_0] : memref<16x32xf32, #tpu.memory_space<vmem>>, vector<16x32xf32>
    %1 = arith.truncf %0 : vector<16x32xf32> to vector<16x32xbf16>
    %c0_1 = arith.constant 0 : index
    %c0_2 = arith.constant 0 : index
    %2 = vector.load %arg2[%c0_1, %c0_2] : memref<32x64xbf16, #tpu.memory_space<vmem>>, vector<32x64xbf16>
    %cst = arith.constant dense<0.000000e+00> : vector<16x64xf32>
    %3 = tpu.matmul %1, %2, %cst {dimension_numbers = #tpu.dot_dimension_numbers<[1], [0], [0], [1], [0, 0, 1, 1], [], []>} : vector<16x32xbf16>, vector<32x64xbf16>, vector<16x64xf32> -> vector<16x64xf32>
    %c0_3 = arith.constant 0 : index
    %c0_4 = arith.constant 0 : index
    %4 = vector.load %arg4[%c0_3, %c0_4] : memref<1x64xf32, #tpu.memory_space<vmem>>, vector<1x64xf32>
    %5 = vector.broadcast %4 : vector<1x64xf32> to vector<16x64xf32>
    %6 = arith.addf %3, %5 : vector<16x64xf32>
    %c0_5 = arith.constant 0 : index
    %c0_6 = arith.constant 0 : index
    %7 = vector.load %arg3[%c0_5, %c0_6] : memref<32x64xbf16, #tpu.memory_space<vmem>>, vector<32x64xbf16>
    %cst_7 = arith.constant dense<0.000000e+00> : vector<16x64xf32>
    %8 = tpu.matmul %1, %7, %cst_7 {dimension_numbers = #tpu.dot_dimension_numbers<[1], [0], [0], [1], [0, 0, 1, 1], [], []>} : vector<16x32xbf16>, vector<32x64xbf16>, vector<16x64xf32> -> vector<16x64xf32>
    %c0_8 = arith.constant 0 : index
    %c0_9 = arith.constant 0 : index
    %9 = vector.load %arg5[%c0_8, %c0_9] : memref<1x64xf32, #tpu.memory_space<vmem>>, vector<1x64xf32>
    %10 = vector.broadcast %9 : vector<1x64xf32> to vector<16x64xf32>
    %11 = arith.addf %8, %10 : vector<16x64xf32>
    %cst_10 = arith.constant 0.000000e+00 : f32
    %12 = vector.broadcast %cst_10 : f32 to vector<16x64xf32>
    %13 = arith.subf %12, %11 : vector<16x64xf32>
    %14 = math.exp %13 : vector<16x64xf32>
    %cst_11 = arith.constant 1.000000e+00 : f32
    %15 = vector.broadcast %cst_11 : f32 to vector<16x64xf32>
    %16 = arith.addf %15, %14 : vector<16x64xf32>
    %17 = tpu.reciprocal %16 {approx = true} : vector<16x64xf32> -> vector<16x64xf32>
    %18 = arith.mulf %6, %17 : vector<16x64xf32>
    %cst_12 = arith.constant 0.000000e+00 : f32
    %19 = vector.broadcast %cst_12 : f32 to vector<16x64xf32>
    %20 = arith.subf %19, %18 : vector<16x64xf32>
    %21 = math.exp %20 : vector<16x64xf32>
    %cst_13 = arith.constant 1.000000e+00 : f32
    %22 = vector.broadcast %cst_13 : f32 to vector<16x64xf32>
    %23 = arith.addf %22, %21 : vector<16x64xf32>
    %24 = tpu.reciprocal %23 {approx = true} : vector<16x64xf32> -> vector<16x64xf32>
    %25 = arith.mulf %18, %24 : vector<16x64xf32>
    %26 = arith.truncf %25 : vector<16x64xf32> to vector<16x64xbf16>
    %c0_14 = arith.constant 0 : index
    %c0_15 = arith.constant 0 : index
    %27 = vector.load %arg6[%c0_14, %c0_15] : memref<64x32xbf16, #tpu.memory_space<vmem>>, vector<64x32xbf16>
    %cst_16 = arith.constant dense<0.000000e+00> : vector<16x32xf32>
    %28 = tpu.matmul %26, %27, %cst_16 {dimension_numbers = #tpu.dot_dimension_numbers<[1], [0], [0], [1], [0, 0, 1, 1], [], []>} : vector<16x64xbf16>, vector<64x32xbf16>, vector<16x32xf32> -> vector<16x32xf32>
    %c0_17 = arith.constant 0 : index
    %c0_18 = arith.constant 0 : index
    %29 = vector.load %arg7[%c0_17, %c0_18] : memref<1x32xf32, #tpu.memory_space<vmem>>, vector<1x32xf32>
    %30 = vector.broadcast %29 : vector<1x32xf32> to vector<16x32xf32>
    %31 = arith.addf %28, %30 : vector<16x32xf32>
    %c0_19 = arith.constant 0 : index
    %c0_20 = arith.constant 0 : index
    %32 = vector.load %arg8[%c0_19, %c0_20] : memref<16x32xf32, #tpu.memory_space<vmem>>, vector<16x32xf32>
    tpu.vector_store %arg8[%c0_19, %c0_20], %31 {strides = array<i32>} : memref<16x32xf32, #tpu.memory_space<vmem>>, vector<16x32xf32>,
    return
  }
  func.func @transform_0(%arg0: i32) -> (i32, i32) {
    %c0_i32 = arith.constant 0 : i32
    %c0_i32_0 = arith.constant 0 : i32
    return %arg0, %c0_i32 : i32, i32
  }
  func.func @transform_1(%arg0: i32) -> (i32, i32) {
    %c0_i32 = arith.constant 0 : i32
    %c0_i32_0 = arith.constant 0 : i32
    %c0_i32_1 = arith.constant 0 : i32
    return %c0_i32, %c0_i32_0 : i32, i32
  }
  func.func @transform_2(%arg0: i32) -> (i32, i32) {
    %c0_i32 = arith.constant 0 : i32
    %c0_i32_0 = arith.constant 0 : i32
    %c0_i32_1 = arith.constant 0 : i32
    return %c0_i32, %c0_i32_0 : i32, i32
  }
  func.func @transform_3(%arg0: i32) -> (i32, i32) {
    %c0_i32 = arith.constant 0 : i32
    %c0_i32_0 = arith.constant 0 : i32
    %c0_i32_1 = arith.constant 0 : i32
    return %c0_i32, %c0_i32_0 : i32, i32
  }
  func.func @transform_4(%arg0: i32) -> (i32, i32) {
    %c0_i32 = arith.constant 0 : i32
    %c0_i32_0 = arith.constant 0 : i32
    %c0_i32_1 = arith.constant 0 : i32
    return %c0_i32, %c0_i32_0 : i32, i32
  }
  func.func @transform_5(%arg0: i32) -> (i32, i32) {
    %c0_i32 = arith.constant 0 : i32
    %c0_i32_0 = arith.constant 0 : i32
    %c0_i32_1 = arith.constant 0 : i32
    return %c0_i32, %c0_i32_0 : i32, i32
  }
  func.func @transform_6(%arg0: i32) -> (i32, i32) {
    %c0_i32 = arith.constant 0 : i32
    %c0_i32_0 = arith.constant 0 : i32
    %c0_i32_1 = arith.constant 0 : i32
    return %c0_i32, %c0_i32_0 : i32, i32
  }
  func.func @transform_7(%arg0: i32) -> (i32, i32) {
    %c0_i32 = arith.constant 0 : i32
    %c0_i32_0 = arith.constant 0 : i32
    return %arg0, %c0_i32 : i32, i32
  }
}

</mosaic_0001>

<llo_original>
// kernel: tpu_custom_call.1
$region0: #{tpu_custom_call.1}
  #allocation0 [shape = 'u32[]', space=smem, size = 0x4, offset = 0x4, fixed_abs, tag = 'smem constant byte address 0x4 - core index']
  #allocation1 [shape = 'u32[144,128]{1,0:T(1,128)}', space=vmem, size = 0x12000, scoped, tag = 'internal scratch']
  %s0 = inlined_call_operand.vmem [shape: f32[16,32], index: 0, kind: input, shape index: {}]
  %s1 = inlined_call_operand.vmem [shape: bf16[32,64], index: 1, kind: input, shape index: {}]
  %s2 = inlined_call_operand.vmem [shape: bf16[32,64], index: 2, kind: input, shape index: {}]
  %s3 = inlined_call_operand.vmem [shape: f32[1,64], index: 3, kind: input, shape index: {}]
  %s4 = inlined_call_operand.vmem [shape: f32[1,64], index: 4, kind: input, shape index: {}]
  %s5 = inlined_call_operand.vmem [shape: bf16[64,32], index: 5, kind: input, shape index: {}]
  %s6 = inlined_call_operand.vmem [shape: f32[1,32], index: 6, kind: input, shape index: {}]
  %s7 = inlined_call_operand.hbm [shape: f32[16,32], index: 7, kind: output, shape index: {}]
  %s8 = sld [smem:[#allocation0]]
  $region38: #{tpu_custom_call.1} parent=0
    _
  %s10 = ssub.s32 1, %s8
  %s11 = scalar_select 0, %s10, %s8
  $region1: #{tpu_custom_call.1} parent=0
    #allocation2 [shape = 'u8[8192]{0}', space=vmem, size = 0x2000, scoped, tag = 'output window, operand 0, single buffered']
    #allocation3 [shape = 's32[1]{0}', space=sflag, size = 0x4, scoped, tag = 'scoped memory for tpu_custom_call.1']
    %12 = vsyncpa [#allocation3], 0
    // Predicated region
    $region2: #{tpu_custom_call.1} parent=1 // pred_check
      _
    $region3: #{tpu_custom_call.1} parent=1 // pred_check_branch
      %14 = sbr.rel (0) target = $region5
    $region4: #{tpu_custom_call.1} parent=1 // pred_region
      _
    $region5: #{tpu_custom_call.1} parent=1 // pred_fallthru
      _
    // Predicated region
    $region6: #{tpu_custom_call.1} parent=1 // pred_check
      _
    $region7: #{tpu_custom_call.1} parent=1 // pred_check_branch
      %16 = sbr.rel (0) target = $region9
    $region8: #{tpu_custom_call.1} parent=1 // pred_region
      _
    $region9: #{tpu_custom_call.1} parent=1 // pred_fallthru
      _
    // Predicated region
    $region10: #{tpu_custom_call.1} parent=1 // pred_check
      _
    $region11: #{tpu_custom_call.1} parent=1 // pred_check_branch
      %18 = sbr.rel (0) target = $region13
    $region12: #{tpu_custom_call.1} parent=1 // pred_region
      _
    $region13: #{tpu_custom_call.1} parent=1 // pred_fallthru
      _
    // Predicated region
    $region14: #{tpu_custom_call.1} parent=1 // pred_check
      _
    $region15: #{tpu_custom_call.1} parent=1 // pred_check_branch
      %20 = sbr.rel (0) target = $region17
    $region16: #{tpu_custom_call.1} parent=1 // pred_region
      _
    $region17: #{tpu_custom_call.1} parent=1 // pred_fallthru
      _
    // Predicated region
    $region18: #{tpu_custom_call.1} parent=1 // pred_check
      _
    $region19: #{tpu_custom_call.1} parent=1 // pred_check_branch
      %22 = sbr.rel (0) target = $region21
    $region20: #{tpu_custom_call.1} parent=1 // pred_region
      _
    $region21: #{tpu_custom_call.1} parent=1 // pred_fallthru
      _
    // Predicated region
    $region22: #{tpu_custom_call.1} parent=1 // pred_check
      _
    $region23: #{tpu_custom_call.1} parent=1 // pred_check_branch
      %24 = sbr.rel (0) target = $region25
    $region24: #{tpu_custom_call.1} parent=1 // pred_region
      _
    $region25: #{tpu_custom_call.1} parent=1 // pred_fallthru
      _
    // Predicated region
    $region26: #{tpu_custom_call.1} parent=1 // pred_check
      _
    $region27: #{tpu_custom_call.1} parent=1 // pred_check_branch
      %26 = sbr.rel (0) target = $region29
    $region28: #{tpu_custom_call.1} parent=1 // pred_region
      _
    $region29: #{tpu_custom_call.1} parent=1 // pred_fallthru
      _
    %v28 = vld [vmem:[%s0] sm:$0xff]
    %v29 = vld [vmem:[%s0 + $0x8] sm:$0xff]
    %v30 = vpack.c.bf16 %v29, %v28
    %v31 = vld [vmem:[%s1] sm:$0xf]
    %v32 = vld [vmem:[%s1 + $0x4] sm:$0xf]
    %v33 = vld [vmem:[%s1 + $0x8] sm:$0xf]
    %v34 = vld [vmem:[%s1 + $0xc] sm:$0xf]
    %v35 = vld [vmem:[%s3] sm:$0x1]
    %v37 = vlaneseq
    %v38 = vshrl.u32 %v37, 7
    %v39 = vsub.s32 0, %v38
    %v40 = vrot.slane %v35, %v39
    %v46 = vunpack.c.l.b16 %v31
    %v47 = vunpack.c.l.b16 %v32
    %v48 = vunpack.c.l.b16 %v33
    %v49 = vunpack.c.l.b16 %v34
    %v50 = vpack.c.b16 %v47, %v46
    %v51 = vpack.c.b16 %v49, %v48
    %vm54 = vcmask 261120
    %v56 = vsel %vm54, %v30, 0
    %58 = vmatprep.subr.bf16.mxu0 0
    %59 = vmatpush1.bf16.msra.mxu0 0
    %60 = vmatprep.subr.bf16.mxu0 0
    %61 = vmatpush1.bf16.msra.mxu0 0
    %62 = vmatprep.subr.bf16.mxu0 0
    %63 = vmatpush1.bf16.msra.mxu0 0
    %64 = vmatprep.subr.bf16.mxu0 0
    %65 = vmatpush1.bf16.msra.mxu0 0
    %66 = vmatprep.subr.bf16.mxu0 0
    %67 = vmatpush1.bf16.msra.mxu0 0
    %68 = vmatprep.subr.bf16.mxu0 0
    %69 = vmatpush1.bf16.msra.mxu0 0
    %70 = vmatprep.subr.bf16.mxu0 0
    %71 = vmatpush1.bf16.msra.mxu0 %v51
    %72 = vmatprep.subr.bf16.mxu0 0
    %73 = vmatpush1.bf16.msra.mxu0 %v50
    %74 = vmatprep.subr.bf16.mxu0 0
    %75 = vmatpush2.bf16.msra.mxu0 0
    %76 = vmatprep.subr.bf16.mxu0 0
    %77 = vmatpush2.bf16.msra.mxu0 0
    %78 = vmatprep.subr.bf16.mxu0 0
    %79 = vmatpush2.bf16.msra.mxu0 0
    %80 = vmatprep.subr.bf16.mxu0 0
    %81 = vmatpush2.bf16.msra.mxu0 0
    %82 = vmatprep.subr.bf16.mxu0 0
    %83 = vmatpush2.bf16.msra.mxu0 0
    %84 = vmatprep.subr.bf16.mxu0 0
    %85 = vmatpush2.bf16.msra.mxu0 0
    %86 = vmatprep.subr.bf16.mxu0 0
    %87 = vmatpush2.bf16.msra.mxu0 0
    %88 = vmatprep.subr.bf16.mxu0 0
    %89 = vmatpush2.bf16.msra.mxu0 0
    %90 = vmatprep.mubr.bf16.mxu0 0
    %91 = vmatmul.mubr.bf16.gmra.mxu0 %v56
    %v92 = vpop.f32.mrf.mxu0
    %v93 = vadd.f32 %v40, %v92
    %v94 = vpop.f32.mrf.mxu0
    %v95 = vpop.f32.mrf.mxu0
    %v96 = vadd.f32 %v40, %v95
    %v97 = vpop.f32.mrf.mxu0
    %98 = vdwg.mxu0
    %v99 = vld [vmem:[%s2] sm:$0xf]
    %v100 = vld [vmem:[%s2 + $0x4] sm:$0xf]
    %v101 = vld [vmem:[%s2 + $0x8] sm:$0xf]
    %v102 = vld [vmem:[%s2 + $0xc] sm:$0xf]
    %v103 = vld [vmem:[%s4] sm:$0x1]
    %v105 = vlaneseq
    %v106 = vshrl.u32 %v105, 7
    %v107 = vsub.s32 0, %v106
    %v108 = vrot.slane %v103, %v107
    %v114 = vunpack.c.l.b16 %v99
    %v115 = vunpack.c.l.b16 %v100
    %v116 = vunpack.c.l.b16 %v101
    %v117 = vunpack.c.l.b16 %v102
    %v118 = vpack.c.b16 %v115, %v114
    %v119 = vpack.c.b16 %v117, %v116
    %122 = vmatprep.subr.bf16.mxu0 0
    %123 = vmatpush1.bf16.msra.mxu0 0
    %124 = vmatprep.subr.bf16.mxu0 0
    %125 = vmatpush1.bf16.msra.mxu0 0
    %126 = vmatprep.subr.bf16.mxu0 0
    %127 = vmatpush1.bf16.msra.mxu0 0
    %128 = vmatprep.subr.bf16.mxu0 0
    %129 = vmatpush1.bf16.msra.mxu0 0
    %130 = vmatprep.subr.bf16.mxu0 0
    %131 = vmatpush1.bf16.msra.mxu0 0
    %132 = vmatprep.subr.bf16.mxu0 0
    %133 = vmatpush1.bf16.msra.mxu0 0
    %134 = vmatprep.subr.bf16.mxu0 0
    %135 = vmatpush1.bf16.msra.mxu0 %v119
    %136 = vmatprep.subr.bf16.mxu0 0
    %137 = vmatpush1.bf16.msra.mxu0 %v118
    %138 = vmatprep.subr.bf16.mxu0 0
    %139 = vmatpush2.bf16.msra.mxu0 0
    %140 = vmatprep.subr.bf16.mxu0 0
    %141 = vmatpush2.bf16.msra.mxu0 0
    %142 = vmatprep.subr.bf16.mxu0 0
    %143 = vmatpush2.bf16.msra.mxu0 0
    %144 = vmatprep.subr.bf16.mxu0 0
    %145 = vmatpush2.bf16.msra.mxu0 0
    %146 = vmatprep.subr.bf16.mxu0 0
    %147 = vmatpush2.bf16.msra.mxu0 0
    %148 = vmatprep.subr.bf16.mxu0 0
    %149 = vmatpush2.bf16.msra.mxu0 0
    %150 = vmatprep.subr.bf16.mxu0 0
    %151 = vmatpush2.bf16.msra.mxu0 0
    %152 = vmatprep.subr.bf16.mxu0 0
    %153 = vmatpush2.bf16.msra.mxu0 0
    %154 = vmatprep.mubr.bf16.mxu0 0
    %155 = vmatmul.mubr.bf16.gmra.mxu0 %v56
    %v156 = vpop.f32.mrf.mxu0
    %v157 = vadd.f32 %v108, %v156
    %v158 = vpop.f32.mrf.mxu0
    %v159 = vpop.f32.mrf.mxu0
    %v160 = vadd.f32 %v108, %v159
    %v161 = vpop.f32.mrf.mxu0
    %162 = vdwg.mxu0
    %v163 = vsub.f32 0.0, %v157
    %v164 = vsub.f32 0.0, %v160
    %v165 = vmul.f32 %v163, 1.442695
    %v166 = vpow.pop %v165
    %v167 = vmul.f32 %v164, 1.442695
    %v168 = vpow.pop %v167
    %v169 = vadd.f32 %v166, 1.0
    %v170 = vadd.f32 %v168, 1.0
    %v171 = vrcp.pop %v169
    %v172 = vrcp.pop %v170
    %v173 = vmul.f32 %v93, %v171
    %v174 = vmul.f32 %v96, %v172
    %v175 = vsub.f32 0.0, %v173
    %v176 = vsub.f32 0.0, %v174
    %v177 = vmul.f32 %v175, 1.442695
    %v178 = vpow.pop %v177
    %v179 = vmul.f32 %v176, 1.442695
    %v180 = vpow.pop %v179
    %v181 = vadd.f32 %v178, 1.0
    %v182 = vadd.f32 %v180, 1.0
    %v183 = vrcp.pop %v181
    %v184 = vrcp.pop %v182
    %v185 = vmul.f32 %v173, %v183
    %v186 = vmul.f32 %v174, %v184
    %v187 = vpack.c.bf16 %v186, %v185
    %v188 = vld [vmem:[%s5] sm:$0xf]
    %v189 = vld [vmem:[%s5 + $0x4] sm:$0xf]
    %v190 = vld [vmem:[%s5 + $0x8] sm:$0xf]
    %v191 = vld [vmem:[%s5 + $0xc] sm:$0xf]
    %v192 = vld [vmem:[%s5 + $0x10] sm:$0xf]
    %v193 = vld [vmem:[%s5 + $0x14] sm:$0xf]
    %v194 = vld [vmem:[%s5 + $0x18] sm:$0xf]
    %v195 = vld [vmem:[%s5 + $0x1c] sm:$0xf]
    %v196 = vld [vmem:[%s6] sm:$0x1]
    %v198 = vlaneseq
    %v199 = vshrl.u32 %v198, 7
    %v200 = vsub.s32 0, %v199
    %v201 = vrot.slane %v196, %v200
    %v211 = vunpack.c.l.b16 %v188
    %v212 = vunpack.c.l.b16 %v189
    %v213 = vunpack.c.l.b16 %v190
    %v214 = vunpack.c.l.b16 %v191
    %v215 = vunpack.c.l.b16 %v192
    %v216 = vunpack.c.l.b16 %v193
    %v217 = vunpack.c.l.b16 %v194
    %v218 = vunpack.c.l.b16 %v195
    %v219 = vpack.c.b16 %v212, %v211
    %v220 = vpack.c.b16 %v214, %v213
    %v221 = vpack.c.b16 %v216, %v215
    %v222 = vpack.c.b16 %v218, %v217
    %vm227 = vcmask 523264
    %v229 = vsel %vm227, %v187, 0
    %231 = vmatprep.subr.bf16.mxu0 0
    %232 = vmatpush1.bf16.msra.mxu0 0
    %233 = vmatprep.subr.bf16.mxu0 0
    %234 = vmatpush1.bf16.msra.mxu0 0
    %235 = vmatprep.subr.bf16.mxu0 0
    %236 = vmatpush1.bf16.msra.mxu0 0
    %237 = vmatprep.subr.bf16.mxu0 0
    %238 = vmatpush1.bf16.msra.mxu0 0
    %239 = vmatprep.subr.bf16.mxu0 0
    %240 = vmatpush1.bf16.msra.mxu0 %v222
    %241 = vmatprep.subr.bf16.mxu0 0
    %242 = vmatpush1.bf16.msra.mxu0 %v221
    %243 = vmatprep.subr.bf16.mxu0 0
    %244 = vmatpush1.bf16.msra.mxu0 %v220
    %245 = vmatprep.subr.bf16.mxu0 0
    %246 = vmatpush1.bf16.msra.mxu0 %v219
    %247 = vmatprep.subr.bf16.mxu0 0
    %248 = vmatpush2.bf16.msra.mxu0 0
    %249 = vmatprep.subr.bf16.mxu0 0
    %250 = vmatpush2.bf16.msra.mxu0 0
    %251 = vmatprep.subr.bf16.mxu0 0
    %252 = vmatpush2.bf16.msra.mxu0 0
    %253 = vmatprep.subr.bf16.mxu0 0
    %254 = vmatpush2.bf16.msra.mxu0 0
    %255 = vmatprep.subr.bf16.mxu0 0
    %256 = vmatpush2.bf16.msra.mxu0 0
    %257 = vmatprep.subr.bf16.mxu0 0
    %258 = vmatpush2.bf16.msra.mxu0 0
    %259 = vmatprep.subr.bf16.mxu0 0
    %260 = vmatpush2.bf16.msra.mxu0 0
    %261 = vmatprep.subr.bf16.mxu0 0
    %262 = vmatpush2.bf16.msra.mxu0 0
    %263 = vmatprep.mubr.bf16.mxu0 0
    %264 = vmatmul.mubr.bf16.gmra.mxu0 %v229
    %v265 = vpop.f32.mrf.mxu0
    %v266 = vadd.f32 %v201, %v265
    %v267 = vpop.f32.mrf.mxu0
    %v268 = vpop.f32.mrf.mxu0
    %v269 = vadd.f32 %v201, %v268
    %v270 = vpop.f32.mrf.mxu0
    %271 = vdwg.mxu0
    %272 = vst.msk [vmem:[#allocation2] sm:$0xff] %vm54, %v266
    %273 = vst.msk [vmem:[#allocation2 + $0x8] sm:$0xff] %vm54, %v269
    // Predicated region
    $region30: #{tpu_custom_call.1} parent=1 // pred_check
      _
    $region31: #{tpu_custom_call.1} parent=1 // pred_check_branch
      %275 = sbr.rel (0) target = $region33
    $region32: #{tpu_custom_call.1} parent=1 // pred_region
      %s277 = ssub.s32 256, 256
      %278 = vsyncadd [#allocation3], %s277
      %s279 = sshll.u32 [#allocation2], 4
      %s280 = int_to_ptr.vmem [resolvable:$true] %s279
      %285 = dma.vmem_to_hbm [thread:$0]  %s280, 256, %s7, [#allocation3], 128, 128, 8
    $region33: #{tpu_custom_call.1} parent=1 // pred_fallthru
      _
    // Predicated region
    $region34: #{tpu_custom_call.1} parent=1 // pred_check
      _
    $region35: #{tpu_custom_call.1} parent=1 // pred_check_branch
      %287 = sbr.rel (0) target = $region37
    $region36: #{tpu_custom_call.1} parent=1 // pred_region
      %288 = dma.done [#allocation3], 256
    $region37: #{tpu_custom_call.1} parent=1 // pred_fallthru
      _
    %289 = vsyncpa [#allocation3], 1

</llo_original>
